<compile_context>
chip_gen: v7x
topology: tpu7x:2x2x1
jax: 0.10.0
libtpu: 0.0.40
codegen_flags: <defaults>
</compile_context>

<pallas_src>
import functools

import jax
import jax.numpy as jnp
import numpy as np
from jax.experimental import pallas as pl
from jax.experimental.pallas import tpu as pltpu


def _choose_pixel_tile(hw, want):
    """Largest tile <= want that divides hw and is a multiple of 128 (or hw itself)."""
    if hw <= want:
        return hw
    t = (min(want, hw) // 128) * 128
    while t >= 128:
        if hw % t == 0:
            return t
        t -= 128
    # TODO(synk): add explicit tail masking for H*W with no 128-multiple divisor.
    return hw


def _mar_loss_kernel(sel_ref, prob_ref, tgt_ref, out_ref, *, num_merged, fg_map):
    """One grid step = one (C, TP) pixel tile of one batch element.

    sel_ref : (M, C)  f32        static 0/1 channel-merge matrix (resident)
    prob_ref: (C, TP) f32/bf16   probabilities for this pixel tile
    tgt_ref : (1, TP) i32        original integer labels for this pixel tile
    out_ref : (M, 4)  f32        per-batch accumulator:
                                 [intersection, sum(p^2), sum(onehot), sum(log p_target)]
                                 (column 3 is only populated on row 0)
    """
    i = pl.program_id(1)

    @pl.when(i == 0)
    def _init():
        out_ref[...] = jnp.zeros_like(out_ref)

    p = prob_ref[...]                                    # (C, TP)
    sel = sel_ref[...].astype(p.dtype)                   # (M, C)

    # Channel merge on the MXU: mp[m, x] = sum_c sel[m, c] * p[c, x]
    mp = jnp.dot(sel, p, preferred_element_type=jnp.float32)        # (M, TP) f32

    # Label remap: present foreground classes -> 1..M-1, everything else -> 0.
    t = tgt_ref[...]                                     # (1, TP) i32
    mt = jnp.zeros_like(t)
    for orig_c, new_c in fg_map:                         # static, small unroll
        mt = jnp.where(t == orig_c, jnp.int32(new_c), mt)

    class_ids = jax.lax.broadcasted_iota(jnp.int32, (num_merged, mp.shape[1]), 0)
    onehot = (mt == class_ids).astype(jnp.float32)       # (M, TP)

    pg = mp * onehot                                     # (M, TP)
    inter = jnp.sum(pg, axis=1, keepdims=True)           # (M, 1)  sum(p * onehot)
    psq = jnp.sum(mp * mp, axis=1, keepdims=True)        # (M, 1)  sum(p^2)
    gsum = jnp.sum(onehot, axis=1, keepdims=True)        # (M, 1)  sum(onehot) == sum(onehot^2)

    # CE term from the target-class probability only: log over (1, TP), not (M, TP).
    p_tgt = jnp.sum(pg, axis=0, keepdims=True)           # (1, TP)
    logp_tgt = jnp.log(jnp.maximum(p_tgt, 1e-4))         # == onehot-selected log(clamp(prob))
    ce_tile = jnp.sum(logp_tgt, axis=1, keepdims=True)   # (1, 1)
    row0 = jax.lax.broadcasted_iota(jnp.int32, (num_merged, 1), 0) == 0
    ce_col = jnp.where(row0, ce_tile, 0.0)               # (M, 1), value only on row 0

    # One coalesced read-modify-write of the resident output/accumulator block.
    out_ref[...] += jnp.concatenate([inter, psq, gsum, ce_col], axis=1)


def mar_loss_pallas(prob, target, class_flag, *, tile_pixels=4096):
    """prob: [N, C, H, W] float probabilities (f32 or bf16); target: [N, 1, H, W] int labels;
    class_flag: static python list of length C (class_flag[0] assumed 1, as in the
    reference where np.sum(class_flag) equals the number of merged channels)."""
    flags = [int(f) for f in class_flag]
    N, C, H, W = prob.shape
    assert len(flags) == C
    assert flags[0] > 0, "reference semantics assume background flag class_flag[0] == 1"

    fg_idx = [c for c in range(C) if c > 0 and flags[c] > 0]
    num_merged = 1 + len(fg_idx)                      # == np.sum(class_flag)
    fg_map = tuple((c, k + 1) for k, c in enumerate(fg_idx))

    # Static 0/1 channel-merge matrix: row 0 = background (+ absent classes),
    # row k+1 = k-th present foreground class.
    sel_np = np.zeros((num_merged, C), np.float32)
    for c in range(C):
        if c == 0 or flags[c] == 0:
            sel_np[0, c] = 1.0
    for c, new_c in fg_map:
        sel_np[new_c, c] = 1.0
    sel = jnp.asarray(sel_np)

    HW = H * W
    tp = _choose_pixel_tile(HW, tile_pixels)
    assert HW % tp == 0, "pixel tile must divide H*W"
    grid = (N, HW // tp)

    # No transpose: NCHW -> (N, C, HW) and (N, 1, HW) are free reshapes.
    prob3 = prob.reshape(N, C, HW)
    tgt3 = target.reshape(N, 1, HW).astype(jnp.int32)

    kernel = functools.partial(_mar_loss_kernel, num_merged=num_merged, fg_map=fg_map)

    partials = pl.pallas_call(
        kernel,
        out_shape=jax.ShapeDtypeStruct((N, num_merged, 4), jnp.float32),
        grid_spec=pltpu.PrefetchScalarGridSpec(
            num_scalar_prefetch=0,
            grid=grid,
            in_specs=[
                pl.BlockSpec((num_merged, C), lambda n, i: (0, 0)),     # sel (resident)
                pl.BlockSpec((None, C, tp), lambda n, i: (n, 0, i)),    # prob tile
                pl.BlockSpec((None, 1, tp), lambda n, i: (n, 0, i)),    # target tile
            ],
            out_specs=pl.BlockSpec((None, num_merged, 4), lambda n, i: (n, 0, 0)),
        ),
        compiler_params=pltpu.CompilerParams(
            dimension_semantics=("parallel", "arbitrary")),
    )(sel, prob3, tgt3)

    # Tiny finalize in plain JAX on the (N, M, 4) partials (v7x-parallel safe).
    sums = jnp.sum(partials, axis=0)                  # (M, 4)
    inter = sums[:, 0]
    psq = sums[:, 1]
    gsum = sums[:, 2]
    # BinaryDiceLoss(smooth=1, p=2, flag=None) per merged class, averaged (DiceLoss).
    dice_per_class = 1.0 - (1.0 + 2.0 * inter) / (1.0 + psq + gsum)
    l_dice = jnp.mean(dice_per_class)
    # NLLLoss(reduction='mean') over all N*H*W elements.
    l_ce = -jnp.sum(sums[:, 3]) / float(N * HW)
    return l_ce, l_dice


def mar_loss_ref(prob, target, class_flag):
    """Pure-JAX reference matching the PyTorch module."""
    flags = [int(f) for f in class_flag]
    N, C, H, W = prob.shape
    bg_idx = [c for c in range(C) if c == 0 or flags[c] == 0]
    fg_idx = [c for c in range(C) if c > 0 and flags[c] > 0]
    M = 1 + len(fg_idx)

    bg = jnp.sum(prob[:, jnp.asarray(bg_idx)], axis=1, keepdims=True)
    mp = jnp.concatenate([bg] + [prob[:, c:c + 1] for c in fg_idx], axis=1)   # (N, M, H, W)

    mt = jnp.zeros_like(target)
    for k, c in enumerate(fg_idx):
        mt = jnp.where(target == c, k + 1, mt)                                 # (N, 1, H, W)

    logp = jnp.log(jnp.maximum(mp, 1e-4))
    oh = (mt == jnp.arange(M).reshape(1, M, 1, 1)).astype(jnp.float32)         # (N, M, H, W)
    l_ce = -jnp.mean(jnp.sum(oh * logp, axis=1))

    pd = mp.reshape(N, M, -1)
    gt = oh.reshape(N, M, -1)
    inter = 1.0 + 2.0 * jnp.sum(pd * gt, axis=(0, 2))
    union = 1.0 + jnp.sum(pd ** 2 + gt ** 2, axis=(0, 2))
    l_dice = jnp.mean(1.0 - inter / union)
    return l_ce, l_dice


if __name__ == "__main__":
    key = jax.random.PRNGKey(0)
    N, C, H, W = 2, 4, 16, 16
    class_flag = [1, 1, 0, 1]          # classes 1 and 3 present; class 2 folds into background

    k1, k2 = jax.random.split(key)
    logits = jax.random.normal(k1, (N, C, H, W), jnp.float32)
    prob = jax.nn.softmax(logits, axis=1)                        # valid class probabilities
    target = jax.random.randint(k2, (N, 1, H, W), 0, C, jnp.int32)

    l_ce, l_dice = mar_loss_pallas(prob, target, class_flag)
    jax.block_until_ready((l_ce, l_dice))

    r_ce, r_dice = mar_loss_ref(prob, target, class_flag)
    assert abs(float(l_ce) - float(r_ce)) < 1e-4, (float(l_ce), float(r_ce))
    assert abs(float(l_dice) - float(r_dice)) < 1e-4, (float(l_dice), float(r_dice))

    print("KERNEL_OK")
</pallas_src>

<mosaic_0001>
module attributes {stable_mosaic.version = 11 : i64} {
  func.func @_mar_loss_kernel(%arg0: i32, %arg1: i32, %arg2: memref<3x4xf32, #tpu.memory_space<vmem>>, %arg3: memref<1x4x256xf32, #tpu.memory_space<vmem>>, %arg4: memref<1x1x256xi32, #tpu.memory_space<vmem>>, %arg5: memref<1x3x4xf32, #tpu.memory_space<vmem>>) attributes {dimension_semantics = [#tpu.dimension_semantics<parallel>, #tpu.dimension_semantics<arbitrary>], iteration_bounds = array<i64: 2, 1>, scalar_prefetch = 0 : i64, scratch_operands = 0 : i64, tpu.core_type = #tpu.core_type<tc>, window_params = [{pipeline_mode = #tpu.pipeline_mode<synchronous>, transform_indices = @transform_0, window_bounds = array<i64: 3, 4>}, {transform_indices = @transform_1, window_bounds = array<i64: 1, 4, 256>}, {transform_indices = @transform_2, window_bounds = array<i64: 1, 1, 256>}, {transform_indices = @transform_3, window_bounds = array<i64: 1, 3, 4>}]} {
    %c0_i32 = arith.constant 0 : i32
    %0 = arith.cmpi eq, %arg1, %c0_i32 : i32
    %1 = arith.extui %0 : i1 to i32
    %c0_i32_0 = arith.constant 0 : i32
    %2 = arith.cmpi ne, %1, %c0_i32_0 : i32
    scf.if %2 {
      %cst_24 = arith.constant 0.000000e+00 : f32
      %52 = vector.broadcast %cst_24 : f32 to vector<3x4xf32>
      %c0_25 = arith.constant 0 : index
      %c0_26 = arith.constant 0 : index
      %c0_27 = arith.constant 0 : index
      %53 = vector.load %arg5[%c0_25, %c0_26, %c0_27] : memref<1x3x4xf32, #tpu.memory_space<vmem>>, vector<1x3x4xf32>
      %54 = vector.shape_cast %53 : vector<1x3x4xf32> to vector<3x4xf32>
      %55 = vector.shape_cast %52 : vector<3x4xf32> to vector<1x3x4xf32>
      tpu.vector_store %arg5[%c0_25, %c0_26, %c0_27], %55 {strides = array<i32>} : memref<1x3x4xf32, #tpu.memory_space<vmem>>, vector<1x3x4xf32>,
    } else {
    }
    %c0 = arith.constant 0 : index
    %c0_1 = arith.constant 0 : index
    %c0_2 = arith.constant 0 : index
    %3 = vector.load %arg3[%c0, %c0_1, %c0_2] : memref<1x4x256xf32, #tpu.memory_space<vmem>>, vector<1x4x256xf32>
    %4 = vector.shape_cast %3 : vector<1x4x256xf32> to vector<4x256xf32>
    %c0_3 = arith.constant 0 : index
    %c0_4 = arith.constant 0 : index
    %5 = vector.load %arg2[%c0_3, %c0_4] : memref<3x4xf32, #tpu.memory_space<vmem>>, vector<3x4xf32>
    %cst = arith.constant dense<0.000000e+00> : vector<3x256xf32>
    %6 = tpu.matmul %5, %4, %cst {dimension_numbers = #tpu.dot_dimension_numbers<[1], [0], [0], [1], [0, 0, 1, 1], [], []>} : vector<3x4xf32>, vector<4x256xf32>, vector<3x256xf32> -> vector<3x256xf32>
    %c0_5 = arith.constant 0 : index
    %c0_6 = arith.constant 0 : index
    %c0_7 = arith.constant 0 : index
    %7 = vector.load %arg4[%c0_5, %c0_6, %c0_7] : memref<1x1x256xi32, #tpu.memory_space<vmem>>, vector<1x1x256xi32>
    %8 = vector.shape_cast %7 : vector<1x1x256xi32> to vector<1x256xi32>
    %c0_i32_8 = arith.constant 0 : i32
    %9 = vector.broadcast %c0_i32_8 : i32 to vector<1x256xi32>
    %c1_i32 = arith.constant 1 : i32
    %10 = vector.broadcast %c1_i32 : i32 to vector<1x256xi32>
    %11 = arith.cmpi eq, %8, %10 : vector<1x256xi32>
    %c1_i32_9 = arith.constant 1 : i32
    %12 = vector.broadcast %c1_i32_9 : i32 to vector<1x256xi32>
    %13 = arith.select %11, %12, %9 : vector<1x256xi1>, vector<1x256xi32>
    %c3_i32 = arith.constant 3 : i32
    %14 = vector.broadcast %c3_i32 : i32 to vector<1x256xi32>
    %15 = arith.cmpi eq, %8, %14 : vector<1x256xi32>
    %c2_i32 = arith.constant 2 : i32
    %16 = vector.broadcast %c2_i32 : i32 to vector<1x256xi32>
    %17 = arith.select %15, %16, %13 : vector<1x256xi1>, vector<1x256xi32>
    %18 = tpu.iota {dimensions = array<i32: 0>} : vector<3x256xi32>
    %19 = vector.broadcast %17 : vector<1x256xi32> to vector<3x256xi32>
    %20 = arith.cmpi eq, %19, %18 : vector<3x256xi32>
    %21 = arith.extui %20 : vector<3x256xi1> to vector<3x256xi32>
    %22 = arith.sitofp %21 : vector<3x256xi32> to vector<3x256xf32>
    %23 = arith.mulf %6, %22 : vector<3x256xf32>
    %cst_10 = arith.constant dense<0.000000e+00> : vector<3xf32>
    %24 = vector.multi_reduction <add>, %23, %cst_10 [1] : vector<3x256xf32> to vector<3xf32>
    %25 = vector.shape_cast %24 : vector<3xf32> to vector<3x1xf32>
    %26 = arith.mulf %6, %6 : vector<3x256xf32>
    %cst_11 = arith.constant dense<0.000000e+00> : vector<3xf32>
    %27 = vector.multi_reduction <add>, %26, %cst_11 [1] : vector<3x256xf32> to vector<3xf32>
    %28 = vector.shape_cast %27 : vector<3xf32> to vector<3x1xf32>
    %cst_12 = arith.constant dense<0.000000e+00> : vector<3xf32>
    %29 = vector.multi_reduction <add>, %22, %cst_12 [1] : vector<3x256xf32> to vector<3xf32>
    %30 = vector.shape_cast %29 : vector<3xf32> to vector<3x1xf32>
    %cst_13 = arith.constant dense<0.000000e+00> : vector<256xf32>
    %31 = vector.multi_reduction <add>, %23, %cst_13 [0] : vector<3x256xf32> to vector<256xf32>
    %32 = vector.shape_cast %31 : vector<256xf32> to vector<1x256xf32>
    %cst_14 = arith.constant 9.99999974E-5 : f32
    %33 = vector.broadcast %cst_14 : f32 to vector<1x256xf32>
    %34 = arith.maximumf %32, %33 : vector<1x256xf32>
    %35 = math.log %34 : vector<1x256xf32>
    %cst_15 = arith.constant dense<0.000000e+00> : vector<1xf32>
    %36 = vector.multi_reduction <add>, %35, %cst_15 [1] : vector<1x256xf32> to vector<1xf32>
    %37 = vector.shape_cast %36 : vector<1xf32> to vector<1x1xf32>
    %38 = tpu.iota {dimensions = array<i32: 0>} : vector<3x1xi32>
    %c0_i32_16 = arith.constant 0 : i32
    %39 = vector.broadcast %c0_i32_16 : i32 to vector<3x1xi32>
    %40 = arith.cmpi eq, %38, %39 : vector<3x1xi32>
    %cst_17 = arith.constant 0.000000e+00 : f32
    %41 = vector.shape_cast %37 : vector<1x1xf32> to vector<1x1xf32>
    %42 = vector.broadcast %41 : vector<1x1xf32> to vector<3x1xf32>
    %43 = vector.broadcast %cst_17 : f32 to vector<3x1xf32>
    %44 = arith.select %40, %42, %43 : vector<3x1xi1>, vector<3x1xf32>
    %c0_18 = arith.constant 0 : index
    %c0_19 = arith.constant 0 : index
    %c0_20 = arith.constant 0 : index
    %45 = vector.load %arg5[%c0_18, %c0_19, %c0_20] : memref<1x3x4xf32, #tpu.memory_space<vmem>>, vector<1x3x4xf32>
    %46 = vector.shape_cast %45 : vector<1x3x4xf32> to vector<3x4xf32>
    %47 = tpu.concatenate %25, %28, %30, %44 in 1 : vector<3x1xf32>, vector<3x1xf32>, vector<3x1xf32>, vector<3x1xf32> -> vector<3x4xf32>
    %48 = arith.addf %46, %47 : vector<3x4xf32>
    %c0_21 = arith.constant 0 : index
    %c0_22 = arith.constant 0 : index
    %c0_23 = arith.constant 0 : index
    %49 = vector.load %arg5[%c0_21, %c0_22, %c0_23] : memref<1x3x4xf32, #tpu.memory_space<vmem>>, vector<1x3x4xf32>
    %50 = vector.shape_cast %49 : vector<1x3x4xf32> to vector<3x4xf32>
    %51 = vector.shape_cast %48 : vector<3x4xf32> to vector<1x3x4xf32>
    tpu.vector_store %arg5[%c0_21, %c0_22, %c0_23], %51 {strides = array<i32>} : memref<1x3x4xf32, #tpu.memory_space<vmem>>, vector<1x3x4xf32>,
    return
  }
  func.func @transform_0(%arg0: i32, %arg1: i32) -> (i32, i32) {
    %c0_i32 = arith.constant 0 : i32
    %c0_i32_0 = arith.constant 0 : i32
    %c0_i32_1 = arith.constant 0 : i32
    return %c0_i32, %c0_i32_0 : i32, i32
  }
  func.func @transform_1(%arg0: i32, %arg1: i32) -> (i32, i32, i32) {
    %c0_i32 = arith.constant 0 : i32
    %c0_i32_0 = arith.constant 0 : i32
    return %arg0, %c0_i32, %arg1 : i32, i32, i32
  }
  func.func @transform_2(%arg0: i32, %arg1: i32) -> (i32, i32, i32) {
    %c0_i32 = arith.constant 0 : i32
    %c0_i32_0 = arith.constant 0 : i32
    return %arg0, %c0_i32, %arg1 : i32, i32, i32
  }
  func.func @transform_3(%arg0: i32, %arg1: i32) -> (i32, i32, i32) {
    %c0_i32 = arith.constant 0 : i32
    %c0_i32_0 = arith.constant 0 : i32
    %c0_i32_1 = arith.constant 0 : i32
    return %arg0, %c0_i32, %c0_i32_0 : i32, i32, i32
  }
}

</mosaic_0001>

<llo_original>
// kernel: tpu_custom_call.1
$region0: #{tpu_custom_call.1}
  #allocation0 [shape = 'u32[]', space=smem, size = 0x4, offset = 0x4, fixed_abs, tag = 'smem constant byte address 0x4 - core index']
  #allocation1 [shape = 'u32[144,128]{1,0:T(1,128)}', space=vmem, size = 0x12000, scoped, tag = 'internal scratch']
  %s0 = inlined_call_operand.hbm [shape: f32[3,4], index: 0, kind: input, shape index: {}]
  %s1 = inlined_call_operand.hbm [shape: f32[2,4,256], index: 1, kind: input, shape index: {}]
  %s2 = inlined_call_operand.vmem [shape: s32[2,1,256], index: 2, kind: input, shape index: {}]
  %s3 = inlined_call_operand.vmem [shape: f32[2,3,4], index: 3, kind: output, shape index: {}]
  %s4 = sld [smem:[#allocation0]]
  $region57: #{tpu_custom_call.1} parent=0
    _
  %s6 = ssub.s32 1, %s4
  %s7 = scalar_select 0, %s6, %s4
  $region1: #{tpu_custom_call.1} parent=0
    #allocation2 [shape = 'u8[2048]{0}', space=vmem, size = 0x800, scoped, tag = 'input window, operand 0, single buffered']
    #allocation3 [shape = 's32[2]{0}', space=sflag, size = 0x8, scoped, tag = 'scoped memory for tpu_custom_call.1']
    #allocation4 [shape = 'u8[8192]{0}', space=vmem, size = 0x2000, scoped, tag = 'input window, operand 1']
    #allocation5 [shape = 's32[2]{0}', space=sflag, size = 0x8, scoped, tag = 'scoped memory for tpu_custom_call.1']
    %8 = vsyncpa [#allocation3], 0
    %9 = vsyncpa [#allocation5], 0
    %s10 = scalar_lea.sflag [#allocation5], 1
    %11 = vsyncpa %s10, 0
    loop: start=0, step=1, limit=4
    $region2: #{tpu_custom_call.1} parent=1 // loop_pre_header
      _
    $region3: #{tpu_custom_call.1} parent=1 // loop_header
      %s13 = sphi 0, %s17
      %p14 = scmp.ge.s32.totalorder %s13, 4
      %s20 = sphi 0, %s32
      %s21 = sphi 0, %s28
      %s22 = sphi 0, %s20
      %s23 = sphi 0, %s21
      %s24 = sphi 0, %s22
      %s25 = sphi 0, %s23
      %s33 = sphi 0, %s33
      %s35 = sphi 0, %s33
      %s36 = sphi 0, %s35
      %s50 = sphi 0, %s36
      %s58 = sphi 0, %s60
      %s61 = sphi 0, %s58
      %s62 = sphi 0, %s61
      %s78 = sphi 0, %s62
      %s86 = sphi 0, %s88
      %s89 = sphi 0, %s86
      %s90 = sphi 0, %s89
      %s106 = sphi 0, %s90
      %s112 = sphi 0, %s114
      %s115 = sphi 0, %s112
      %s116 = sphi 0, %s115
      %s132 = sphi 0, %s116
    $region4: #{tpu_custom_call.1} parent=1 // loop_header_branch
      %16 = sbr.rel (%p14) target = $region8
    $region5: #{tpu_custom_call.1} parent=1 // loop_body
      %s18 = ssub.s32 %s13, 1
      %s19 = ssub.s32 %s13, 2
      %s26 = sadd.s32 1, %s21
      %p27 = scmp.ge.s32.totalorder %s26, 1
      %s28 = scalar_select %p27, 0, %s26
      %s29 = sadd.s32 1, %s20
      %s30 = scalar_select %p27, %s29, %s20
      %p31 = scmp.ge.s32.totalorder %s30, 2
      %s32 = scalar_select %p31, 0, %s30
      %s34 = sadd.s32 %s33, 1
      %p37 = scmp.eq.s32.totalorder %s13, 1
      %p38 = scmp.ne.s32.totalorder %s33, %s35
      %p39 = scmp.eq.s32.totalorder %s13, 0
      %p40 = por %p38, %p39
      %p41 = scmp.ne.s32.totalorder %s33, %s35
      %p42 = scmp.eq.s32.totalorder %s18, 1
      %p43 = por %p41, %p42
      %p44 = scmp.ne.s32.totalorder %s35, %s36
      %p45 = scmp.eq.s32.totalorder %s18, 0
      %p46 = por %p44, %p45
      %p47 = scmp.ne.s32.totalorder %s35, %s36
      %p48 = scmp.eq.s32.totalorder %s19, 1
      %p49 = por %p47, %p48
      %p51 = scmp.ne.s32.totalorder %s36, %s50
      %p52 = scmp.eq.s32.totalorder %s19, 0
      %p53 = por %p51, %p52
      %s54 = ssub.s32 %s20, %s32
      %s55 = ssub.s32 %s21, %s28
      %s56 = sor.u32 %s54, %s55
      %p57 = scmp.eq.s32.totalorder %s56, 0
      %s59 = sadd.s32 %s58, 1
      %s60 = scalar_select %p57, %s58, %s59
      %p63 = pneg %p57
      %p64 = scmp.eq.s32.totalorder %s13, 1
      %p65 = por %p63, %p64
      %p66 = scmp.ne.s32.totalorder %s58, %s61
      %p67 = scmp.eq.s32.totalorder %s13, 0
      %p68 = por %p66, %p67
      %p69 = scmp.ne.s32.totalorder %s58, %s61
      %p70 = scmp.eq.s32.totalorder %s18, 1
      %p71 = por %p69, %p70
      %p72 = scmp.ne.s32.totalorder %s61, %s62
      %p73 = scmp.eq.s32.totalorder %s18, 0
      %p74 = por %p72, %p73
      %p75 = scmp.ne.s32.totalorder %s61, %s62
      %p76 = scmp.eq.s32.totalorder %s19, 1
      %p77 = por %p75, %p76
      %p79 = scmp.ne.s32.totalorder %s62, %s78
      %p80 = scmp.eq.s32.totalorder %s19, 0
      %p81 = por %p79, %p80
      %s82 = ssub.s32 %s20, %s32
      %s83 = ssub.s32 %s21, %s28
      %s84 = sor.u32 %s82, %s83
      %p85 = scmp.eq.s32.totalorder %s84, 0
      %s87 = sadd.s32 %s86, 1
      %s88 = scalar_select %p85, %s86, %s87
      %p91 = pneg %p85
      %p92 = scmp.eq.s32.totalorder %s13, 1
      %p93 = por %p91, %p92
      %p94 = scmp.ne.s32.totalorder %s86, %s89
      %p95 = scmp.eq.s32.totalorder %s13, 0
      %p96 = por %p94, %p95
      %p97 = scmp.ne.s32.totalorder %s86, %s89
      %p98 = scmp.eq.s32.totalorder %s18, 1
      %p99 = por %p97, %p98
      %p100 = scmp.ne.s32.totalorder %s89, %s90
      %p101 = scmp.eq.s32.totalorder %s18, 0
      %p102 = por %p100, %p101
      %p103 = scmp.ne.s32.totalorder %s89, %s90
      %p104 = scmp.eq.s32.totalorder %s19, 1
      %p105 = por %p103, %p104
      %p107 = scmp.ne.s32.totalorder %s90, %s106
      %p108 = scmp.eq.s32.totalorder %s19, 0
      %p109 = por %p107, %p108
      %s110 = ssub.s32 %s20, %s32
      %p111 = scmp.eq.s32.totalorder %s110, 0
      %s113 = sadd.s32 %s112, 1
      %s114 = scalar_select %p111, %s112, %s113
      %p117 = pneg %p111
      %p118 = scmp.eq.s32.totalorder %s13, 1
      %p119 = por %p117, %p118
      %p120 = scmp.ne.s32.totalorder %s112, %s115
      %p121 = scmp.eq.s32.totalorder %s13, 0
      %p122 = por %p120, %p121
      %p123 = scmp.ne.s32.totalorder %s112, %s115
      %p124 = scmp.eq.s32.totalorder %s18, 1
      %p125 = por %p123, %p124
      %p126 = scmp.ne.s32.totalorder %s115, %s116
      %p127 = scmp.eq.s32.totalorder %s18, 0
      %p128 = por %p126, %p127
      %p129 = scmp.ne.s32.totalorder %s115, %s116
      %p130 = scmp.eq.s32.totalorder %s19, 1
      %p131 = por %p129, %p130
      %p133 = scmp.ne.s32.totalorder %s116, %s132
      %p134 = scmp.eq.s32.totalorder %s19, 0
      %p135 = por %p133, %p134
      %p136 = scmp.le.s32.totalorder 1, %s13
      %p137 = scmp.lt.s32.totalorder %s13, 3
      %p138 = pnand %p136, %p137
      %p139 = pneg %p138
      // Predicated region
      $region9: #{tpu_custom_call.1} parent=5 // pred_check
        _
      $region10: #{tpu_custom_call.1} parent=5 // pred_check_branch
        %141 = sbr.rel (%p138) target = $region12
      $region11: #{tpu_custom_call.1} parent=5 // pred_region
        %s142 = ssub.s32 %s13, 1
        // Predicated region
        $region13: #{tpu_custom_call.1} parent=11 // pred_check
          %p143 = pneg %p46
        $region14: #{tpu_custom_call.1} parent=11 // pred_check_branch
          %145 = sbr.rel (%p143) target = $region16
        $region15: #{tpu_custom_call.1} parent=11 // pred_region
          %s147 = ssub.s32 64, 64
          %148 = vsyncadd [#allocation3], %s147
          %s150 = sshll.u32 [#allocation2], 4
          %s151 = int_to_ptr.vmem [resolvable:$true] %s150
          %153 = dma.hbm_to_vmem [thread:$0]  %s0, 64, %s151, [#allocation3]
        $region16: #{tpu_custom_call.1} parent=11 // pred_fallthru
          _
      $region12: #{tpu_custom_call.1} parent=5 // pred_fallthru
        _
      %p154 = scmp.lt.s32.totalorder %s13, 2
      // Predicated region
      $region17: #{tpu_custom_call.1} parent=5 // pred_check
        %p155 = pneg %p154
      $region18: #{tpu_custom_call.1} parent=5 // pred_check_branch
        %157 = sbr.rel (%p155) target = $region20
      $region19: #{tpu_custom_call.1} parent=5 // pred_region
        // Predicated region
        $region21: #{tpu_custom_call.1} parent=19 // pred_check
          %p158 = pneg %p68
        $region22: #{tpu_custom_call.1} parent=19 // pred_check_branch
          %160 = sbr.rel (%p158) target = $region24
        $region23: #{tpu_custom_call.1} parent=19 // pred_region
          %s161 = sand.u32 %s58, 1
          %s162 = scalar_lea.sflag [#allocation5], %s161
          %s163 = sand.u32 %s58, 1
          %s164 = smul.addr %s163, 8
          %s165 = scalar_lea.vmem [#allocation4], %s164
          %s166 = smul.u32 2, %s21
          %s168 = ssub.s32 128, 128
          %169 = vsyncadd %s162, %s168
          %s170 = smul.addr %s20, 2
          %s171 = sadd.s32 %s166, %s170
          %s172 = smul.addr %s171, 64
          %s173 = scalar_lea.hbm %s1, %s172
          %s175 = sshll.u32 %s165, 4
          %s176 = int_to_ptr.vmem [resolvable:$true] %s175
          %178 = dma.hbm_to_vmem [thread:$0]  %s173, 128, %s176, %s162
        $region24: #{tpu_custom_call.1} parent=19 // pred_fallthru
          _
        // Predicated region
        $region25: #{tpu_custom_call.1} parent=19 // pred_check
          %p179 = pneg %p96
        $region26: #{tpu_custom_call.1} parent=19 // pred_check_branch
          %181 = sbr.rel (%p179) target = $region28
        $region27: #{tpu_custom_call.1} parent=19 // pred_region
          %s182 = smul.u32 2, %s21
          %p183 = scmp.lt.s32.totalorder %s20, 1
          %s184 = scalar_select %p183, %s20, 1
          %p185 = scmp.lt.s32.totalorder %s182, 1
          %s186 = scalar_select %p185, %s182, 1
          %s187 = smul.addr %s184, 2
          %s188 = sadd.s32 %s186, %s187
          %s189 = scalar_lea.vmem %s2, %s188
          %s190 = smul.u32 2, %s21
        $region28: #{tpu_custom_call.1} parent=19 // pred_fallthru
          _
      $region20: #{tpu_custom_call.1} parent=5 // pred_fallthru
        _
      %p191 = scmp.le.s32.totalorder 1, %s13
      %p192 = scmp.lt.s32.totalorder %s13, 3
      %p193 = pnand %p191, %p192
      %p194 = pneg %p193
      // Predicated region
      $region29: #{tpu_custom_call.1} parent=5 // pred_check
        _
      $region30: #{tpu_custom_call.1} parent=5 // pred_check_branch
        %196 = sbr.rel (%p193) target = $region32
      $region31: #{tpu_custom_call.1} parent=5 // pred_region
        %s197 = ssub.s32 %s13, 1
        // Predicated region
        $region33: #{tpu_custom_call.1} parent=31 // pred_check
          %p198 = pneg %p46
        $region34: #{tpu_custom_call.1} parent=31 // pred_check_branch
          %200 = sbr.rel (%p198) target = $region36
        $region35: #{tpu_custom_call.1} parent=31 // pred_region
          %201 = dma.done [#allocation3], 64
        $region36: #{tpu_custom_call.1} parent=31 // pred_fallthru
          _
        %s202 = sand.u32 %s61, 1
        %s203 = scalar_lea.sflag [#allocation5], %s202
        %s204 = sand.u32 %s61, 1
        %s205 = smul.addr %s204, 8
        %s206 = scalar_lea.vmem [#allocation4], %s205
        // Predicated region
        $region37: #{tpu_custom_call.1} parent=31 // pred_check
          %p207 = pneg %p74
        $region38: #{tpu_custom_call.1} parent=31 // pred_check_branch
          %209 = sbr.rel (%p207) target = $region40
        $region39: #{tpu_custom_call.1} parent=31 // pred_region
          %210 = dma.done %s203, 128
        $region40: #{tpu_custom_call.1} parent=31 // pred_fallthru
          _
        %p211 = pneg %p46
        %p212 = pneg %p43
        %s213 = sand.u32 %s61, 1
        %s214 = scalar_lea.sflag [#allocation5], %s213
        %s215 = sand.u32 %s61, 1
        %s216 = smul.addr %s215, 8
        %s217 = scalar_lea.vmem [#allocation4], %s216
        %p218 = pneg %p74
        %p219 = pneg %p71
        %s220 = smul.u32 2, %s23
        %p221 = scmp.lt.s32.totalorder %s22, 1
        %s222 = scalar_select %p221, %s22, 1
        %p223 = scmp.lt.s32.totalorder %s220, 1
        %s224 = scalar_select %p223, %s220, 1
        %s225 = smul.addr %s222, 2
        %s226 = sadd.s32 %s224, %s225
        %s227 = scalar_lea.vmem %s2, %s226
        %p228 = pneg %p102
        %p229 = pneg %p99
        %p230 = pneg %p128
        %p231 = pneg %p125
        %p232 = scmp.lt.s32.totalorder %s22, 1
        %s233 = scalar_select %p232, %s22, 1
        %s234 = smul.addr %s233, 4
        %s235 = scalar_lea.vmem %s3, %s234
        %s236 = smul.u32 2, %s23
        %s237 = smul.u32 2, %s23
        %p238 = scmp.lt.s32.totalorder %s22, 1
        %s239 = scalar_select %p238, %s22, 1
        %p240 = scmp.lt.s32.totalorder %s237, 1
        %s241 = scalar_select %p240, %s237, 1
        %s242 = smul.addr %s239, 2
        %s243 = sadd.s32 %s241, %s242
        %s244 = scalar_lea.vmem %s2, %s243
        %s245 = smul.u32 2, %s23
        %p246 = scmp.lt.s32.totalorder %s22, 1
        %s247 = scalar_select %p246, %s22, 1
        %s248 = smul.addr %s247, 4
        %s249 = scalar_lea.vmem %s3, %s248
        %p250 = scmp.eq.s32.totalorder %s23, 0
        // Predicated region
        $region41: #{tpu_custom_call.1} parent=31 // pred_check
          %p251 = pneg %p250
        $region42: #{tpu_custom_call.1} parent=31 // pred_check_branch
          %253 = sbr.rel (%p251) target = $region44
        $region43: #{tpu_custom_call.1} parent=31 // pred_region
          %vm254 = vcmask 26624
          %255 = vst.msk [vmem:[%s249] sm:$0x7] %vm254, 0.0
        $region44: #{tpu_custom_call.1} parent=31 // pred_fallthru
          _
        %v256 = vld [vmem:[%s206] sm:$0xff]
        %v257 = vld [vmem:[#allocation2] sm:$0x7]
        %v259 = vcombine.high %v256, %v256
        %vm260 = vcmask 31744
        %v262 = vsel %vm260, %v257, 0
        %vm264 = vcmask 1043456
        %v265 = vsel %vm264, %v256, 0
        %v267 = vsel %vm264, %v259, 0
        %269 = vmatprep.subr.mxu0 %v267
        %270 = vmatpush1.msra.mxu0 %v265
        %271 = vmatprep.subr.mxu0 0.0
        %272 = vmatpush1.msra.mxu0 0.0
        %273 = vmatprep.subr.mxu0 0.0
        %274 = vmatpush1.msra.mxu0 0.0
        %275 = vmatprep.subr.mxu0 0.0
        %276 = vmatpush1.msra.mxu0 0.0
        %277 = vmatprep.subr.mxu0 0.0
        %278 = vmatpush1.msra.mxu0 0.0
        %279 = vmatprep.subr.mxu0 0.0
        %280 = vmatpush1.msra.mxu0 0.0
        %281 = vmatprep.subr.mxu0 0.0
        %282 = vmatpush1.msra.mxu0 0.0
        %283 = vmatprep.subr.mxu0 0.0
        %284 = vmatpush1.msra.mxu0 0.0
        %285 = vmatprep.subr.mxu0 0.0
        %286 = vmatpush1.msra.mxu0 0.0
        %287 = vmatprep.subr.mxu0 0.0
        %288 = vmatpush1.msra.mxu0 0.0
        %289 = vmatprep.subr.mxu0 0.0
        %290 = vmatpush1.msra.mxu0 0.0
        %291 = vmatprep.subr.mxu0 0.0
        %292 = vmatpush1.msra.mxu0 0.0
        %293 = vmatprep.subr.mxu0 0.0
        %294 = vmatpush1.msra.mxu0 0.0
        %295 = vmatprep.subr.mxu0 0.0
        %296 = vmatpush1.msra.mxu0 0.0
        %297 = vmatprep.subr.mxu0 0.0
        %298 = vmatpush1.msra.mxu0 0.0
        %299 = vmatprep.subr.mxu0 0.0
        %300 = vmatpush1.msra.mxu0 0.0
        %301 = vmatprep.subr.mxu0 0.0
        %302 = vmatpush1.msra.mxu0 0.0
        %303 = vmatprep.subr.mxu0 0.0
        %304 = vmatpush1.msra.mxu0 0.0
        %305 = vmatprep.subr.mxu0 0.0
        %306 = vmatpush1.msra.mxu0 0.0
        %307 = vmatprep.subr.mxu0 0.0
        %308 = vmatpush1.msra.mxu0 0.0
        %309 = vmatprep.subr.mxu0 0.0
        %310 = vmatpush1.msra.mxu0 0.0
        %311 = vmatprep.subr.mxu0 0.0
        %312 = vmatpush1.msra.mxu0 0.0
        %313 = vmatprep.subr.mxu0 0.0
        %314 = vmatpush1.msra.mxu0 0.0
        %315 = vmatprep.subr.mxu0 0.0
        %316 = vmatpush1.msra.mxu0 0.0
        %317 = vmatprep.subr.mxu0 0.0
        %318 = vmatpush1.msra.mxu0 0.0
        %319 = vmatprep.subr.mxu0 0.0
        %320 = vmatpush1.msra.mxu0 0.0
        %321 = vmatprep.subr.mxu0 0.0
        %322 = vmatpush1.msra.mxu0 0.0
        %323 = vmatprep.subr.mxu0 0.0
        %324 = vmatpush1.msra.mxu0 0.0
        %325 = vmatprep.subr.mxu0 0.0
        %326 = vmatpush1.msra.mxu0 0.0
        %327 = vmatprep.subr.mxu0 0.0
        %328 = vmatpush1.msra.mxu0 0.0
        %329 = vmatprep.subr.mxu0 0.0
        %330 = vmatpush1.msra.mxu0 0.0
        %331 = vmatprep.subr.mxu0 0.0
        %332 = vmatpush1.msra.mxu0 0.0
        %333 = vmatprep.mubr.f32.mxu0 0.0
        %334 = vmatmul.mubr.f32.gmra.mrb[0].mxu0 %v262
        %v335 = vpop.f32.mrb[0].mxu0
        %v336 = vadd.f32 0.0, %v335
        %v337 = vpop.f32.mrb[0].mxu0
        %v338 = vadd.f32 0.0, %v337
        %339 = vdwg.mxu0
        %v340 = vld [vmem:[%s244] sm:$0x3]
        %vm341 = vcmp.eq.s32.totalorder %v340, 1
        %v342 = vsel %vm341, 1, 0
        %vm343 = vcmp.eq.s32.totalorder %v340, 3
        %v344 = vsel %vm343, 2, %v342
        %v345 = vlaneseq
        %v346 = vshrl.u32 %v345, 7
        %v347 = vlaneseq
        %v348 = vshrl.u32 %v347, 7
        %v349 = vsub.s32 0, %v348
        %v350 = vrot.slane %v344, %v349
        %v351 = vlaneseq
        %v352 = vshrl.u32 %v351, 7
        %v353 = vsub.s32 1, %v352
        %v354 = vrot.slane %v344, %v353
        %vm355 = vcmp.eq.s32.totalorder %v350, %v346
        %vm356 = vcmp.eq.s32.totalorder %v354, %v346
        %v357 = vsel %vm355, 1, 0
        %v358 = vsel %vm356, 1, 0
        %v359 = vcvt.s32.f32 %v357
        %v360 = vcvt.s32.f32 %v358
        %v361 = vmul.f32 %v336, %v359
        %v362 = vmul.f32 %v338, %v360
        %vm363 = vcmask 1042432
        %v364 = vsel %vm363, %v361, 0.0
        %v365 = vsel %vm363, %v362, 0.0
        %v366 = vadd.f32 %v364, %v365
        %367 = vadd.xlane.f32.xlu0 %v366
        %v368 = vpop.xlane.xlu0 %367
        %v369 = vmul.f32 %v336, %v336
        %v370 = vmul.f32 %v338, %v338
        %v371 = vsel %vm363, %v369, 0.0
        %v372 = vsel %vm363, %v370, 0.0
        %v373 = vadd.f32 %v371, %v372
        %374 = vadd.xlane.f32.xlu0 %v373
        %v375 = vpop.xlane.xlu0 %374
        %v376 = vsel %vm363, %v359, 0.0
        %v377 = vsel %vm363, %v360, 0.0
        %v378 = vadd.f32 %v376, %v377
        %379 = vadd.xlane.f32.xlu0 %v378
        %v380 = vpop.xlane.xlu0 %379
        %v381 = vrot.slane %v364, 4
        %v382 = vadd.f32 %v364, %v381
        %v383 = vrot.slane %v382, 2
        %v384 = vadd.f32 %v382, %v383
        %v385 = vrot.slane %v384, 1
        %v386 = vadd.f32 %v384, %v385
        %v387 = vrot.slane %v365, 4
        %v388 = vadd.f32 %v365, %v387
        %v389 = vrot.slane %v388, 2
        %v390 = vadd.f32 %v388, %v389
        %v391 = vrot.slane %v390, 1
        %v392 = vadd.f32 %v390, %v391
        %v393 = vmax.f32 %v386, 0.0001
        %v394 = vmax.f32 %v392, 0.0001
        %v395 = vlog2.pop %v393
        %v396 = vmul.f32 %v395, 0.6931472
        %v397 = vlog2.pop %v394
        %v398 = vmul.f32 %v397, 0.6931472
        %v399 = vadd.f32 %v396, %v398
        %400 = vadd.xlane.f32.xlu0 %v399
        %v401 = vpop.xlane.xlu0 %400
        %vm402 = vcmp.eq.s32.totalorder %v346, 0
        %v403 = vsel %vm402, %v401, 0.0
        %v404 = vld [vmem:[%s249] sm:$0x7]
        %vm405 = vcmask 7168
        %v406 = vsel %vm405, %v368, %v375
        %vm407 = vcmask 15360
        %v408 = vsel %vm407, %v406, %v380
        %vm409 = vcmask 23552
        %v410 = vsel %vm409, %v408, %v403
        %v411 = vadd.f32 %v404, %v410
        %vm412 = vcmask 26624
        %413 = vst.msk [vmem:[%s249] sm:$0x7] %vm412, %v411
        %p414 = scmp.lt.s32.totalorder %s22, 1
        %s415 = scalar_select %p414, %s22, 1
        %s416 = smul.addr %s415, 4
        %s417 = scalar_lea.vmem %s3, %s416
        // Predicated region
        $region45: #{tpu_custom_call.1} parent=31 // pred_check
          %p418 = pneg %p125
        $region46: #{tpu_custom_call.1} parent=31 // pred_check_branch
          %420 = sbr.rel (%p418) target = $region48
        $region47: #{tpu_custom_call.1} parent=31 // pred_region
          _
        $region48: #{tpu_custom_call.1} parent=31 // pred_fallthru
          _
      $region32: #{tpu_custom_call.1} parent=5 // pred_fallthru
        _
      %p421 = scmp.le.s32.totalorder 2, %s13
      // Predicated region
      $region49: #{tpu_custom_call.1} parent=5 // pred_check
        %p422 = pneg %p421
      $region50: #{tpu_custom_call.1} parent=5 // pred_check_branch
        %424 = sbr.rel (%p422) target = $region52
      $region51: #{tpu_custom_call.1} parent=5 // pred_region
        %s425 = ssub.s32 %s13, 2
        // Predicated region
        $region53: #{tpu_custom_call.1} parent=51 // pred_check
          %p426 = pneg %p131
        $region54: #{tpu_custom_call.1} parent=51 // pred_check_branch
          %428 = sbr.rel (%p426) target = $region56
        $region55: #{tpu_custom_call.1} parent=51 // pred_region
          %p429 = scmp.lt.s32.totalorder %s24, 1
          %s430 = scalar_select %p429, %s24, 1
          %s431 = smul.addr %s430, 4
          %s432 = scalar_lea.vmem %s3, %s431
        $region56: #{tpu_custom_call.1} parent=51 // pred_fallthru
          _
      $region52: #{tpu_custom_call.1} parent=5 // pred_fallthru
        _
    $region6: #{tpu_custom_call.1} parent=1 // loop_footer
      %s17 = sadd.s32 1, %s13
    $region7: #{tpu_custom_call.1} parent=1 // loop_footer_branch
      %12 = sbr.rel target = $region3
    $region8: #{tpu_custom_call.1} parent=1 // loop_exit
      _
    %433 = vsyncpa [#allocation3], 1
    %s434 = scalar_lea.sflag [#allocation3], 1
    %435 = vsyncpa %s434, 1
    %436 = vsyncpa [#allocation5], 1
    %s437 = scalar_lea.sflag [#allocation5], 1
    %438 = vsyncpa %s437, 1

</llo_original>
